<compile_context>
chip_gen: v5e
topology: v5e:2x2
jax: 0.10.0
libtpu: 0.0.40
codegen_flags: <defaults>
</compile_context>

<pallas_src>
import functools

import jax
import jax.numpy as jnp
from jax.experimental import pallas as pl
from jax.experimental.pallas import tpu as pltpu


def _round_up(x, m):
    return (x + m - 1) // m * m


def _mlp_fused_kernel(*refs, num_layers, compute_dtype):
    """Fused MLP over one batch tile.

    refs = (alpha_smem, x_tile, w0, b0, w1, b1, ..., out_tile)
      alpha_smem: [L]            f32 in SMEM (PReLU slopes; last entry unused)
      x_tile:     [TB, F0p]      compute_dtype in VMEM
      wl:         [Flp, F(l+1)p] compute_dtype in VMEM (PyTorch weight transposed, padded)
      bl:         [1, F(l+1)p]   f32 in VMEM
      out_tile:   [TB, FLp]      out dtype in VMEM
    """
    alpha_ref = refs[0]
    x_ref = refs[1]
    o_ref = refs[-1]
    wb_refs = refs[2:-1]

    h = x_ref[...]
    for layer in range(num_layers):
        w = wb_refs[2 * layer][...]
        b = wb_refs[2 * layer + 1][...]
        # MXU matmul with f32 accumulation; bias add / activation stay in f32.
        y = jnp.dot(h, w, preferred_element_type=jnp.float32) + b
        if layer < num_layers - 1:
            a = alpha_ref[layer]                      # PReLU slope (scalar from SMEM)
            y = jnp.where(y > 0.0, y, a * y)
            # Dropout(0.1): identity in eval mode.
            h = y.astype(compute_dtype)
        else:
            # sigmoid(y) == 0.5*tanh(0.5*y)+0.5  -> tanh runs on the EUP slot.
            h = 0.5 * jnp.tanh(0.5 * y) + 0.5
    o_ref[...] = h.astype(o_ref.dtype)


def mlp_forward(params, x, *, compute_dtype=jnp.bfloat16, out_dtype=jnp.float32,
                batch_tile=512):
    """Fused forward pass.  params: list of (w[in,out], b[out], alpha[1]).  x: [B, Fin]."""
    B, Fin = x.shape
    num_layers = len(params)
    sizes = [Fin] + [w.shape[1] for (w, _, _) in params]
    padded = [_round_up(s, 128) for s in sizes]          # lane-dense feature dims

    cdt = jnp.dtype(compute_dtype)
    min_tile = max(8, 32 // cdt.itemsize)                # 8 rows (f32) / 16 rows (bf16)

    # --- batch tiling ------------------------------------------------------------
    b_ceil = _round_up(B, min_tile)
    tb = min(_round_up(batch_tile, min_tile), b_ceil)
    if pl.cdiv(b_ceil, tb) < 2 and b_ceil >= 2 * min_tile:
        # Guarantee >=2 grid tiles so the "parallel" axis spans both v7x TensorCores.
        tb = _round_up(pl.cdiv(b_ceil, 2), min_tile)
    b_pad = _round_up(b_ceil, tb)
    num_tiles = b_pad // tb

    # --- input: skip the padded copy when already aligned -------------------------
    if B == b_pad and Fin == padded[0]:
        x_pad = x.astype(compute_dtype)                  # no extra HBM pass
    else:
        x_pad = jnp.zeros((b_pad, padded[0]), dtype=compute_dtype)
        x_pad = x_pad.at[:B, :Fin].set(x.astype(compute_dtype))

    # --- PReLU slopes as a device array (jit/grad-safe); last entry unused --------
    alpha_list = [a.reshape(1).astype(jnp.float32) for (_, _, a) in params[:-1]]
    alpha_list.append(jnp.ones((1,), dtype=jnp.float32))
    alphas = jnp.concatenate(alpha_list)

    # --- padded weights / biases ---------------------------------------------------
    w_ops, b_ops = [], []
    flops = 0
    weight_bytes = 0
    for l, (w, b, _) in enumerate(params):
        fin_p, fout_p = padded[l], padded[l + 1]
        w_pad = jnp.zeros((fin_p, fout_p), dtype=compute_dtype)
        w_pad = w_pad.at[: w.shape[0], : w.shape[1]].set(w.astype(compute_dtype))
        b_pad_arr = jnp.zeros((1, fout_p), dtype=jnp.float32)
        b_pad_arr = b_pad_arr.at[0, : b.shape[0]].set(b.astype(jnp.float32))
        w_ops.append(w_pad)
        b_ops.append(b_pad_arr)
        weight_bytes += fin_p * fout_p * cdt.itemsize + fout_p * 4
        flops += 2 * b_pad * fin_p * fout_p

    out_shape = jax.ShapeDtypeStruct((b_pad, padded[-1]), out_dtype)
    cost = pl.CostEstimate(
        flops=flops,
        transcendentals=b_pad * padded[-1],              # tanh per output element
        bytes_accessed=(x_pad.size * cdt.itemsize + weight_bytes
                        + b_pad * padded[-1] * jnp.dtype(out_dtype).itemsize),
    )

    # --- scoped VMEM budget: ~85% of physical, capped at 100 MiB -------------------
    try:
        vmem_cap = int(getattr(pltpu.get_tpu_info(), "vmem_capacity_bytes",
                               64 * 1024 * 1024))
    except Exception:
        vmem_cap = 64 * 1024 * 1024
    vmem_limit = min(int(vmem_cap * 0.85), 100 * 1024 * 1024)

    kernel = functools.partial(
        _mlp_fused_kernel, num_layers=num_layers, compute_dtype=compute_dtype
    )

    def _call(single_buffer_weights):
        if single_buffer_weights:
            # Constant index_map -> DMA'd once; single-buffer to halve resident VMEM.
            const_spec = lambda shape: pl.BlockSpec(
                shape, lambda i: (0, 0), pipeline_mode=pl.Buffered(1))
        else:
            const_spec = lambda shape: pl.BlockSpec(shape, lambda i: (0, 0))

        in_specs = [
            pl.BlockSpec(memory_space=pltpu.SMEM),                 # PReLU slopes
            pl.BlockSpec((tb, padded[0]), lambda i: (i, 0)),       # batch-tiled input
        ]
        operands = [alphas, x_pad]
        for l in range(num_layers):
            in_specs += [const_spec((padded[l], padded[l + 1])),
                         const_spec((1, padded[l + 1]))]
            operands += [w_ops[l], b_ops[l]]

        return pl.pallas_call(
            kernel,
            out_shape=out_shape,
            grid=(num_tiles,),
            in_specs=in_specs,
            out_specs=pl.BlockSpec((tb, padded[-1]), lambda i: (i, 0)),  # lane-dense stores
            compiler_params=pltpu.CompilerParams(
                dimension_semantics=("parallel",),
                vmem_limit_bytes=vmem_limit,
            ),
            cost_estimate=cost,
        )(*operands)

    try:
        out_pad = _call(True)        # single-buffered resident weights
    except Exception:
        out_pad = _call(False)       # fallback if pipeline_mode unsupported

    return out_pad[:B, : sizes[-1]]


def init_mlp_params(key, input_size, output_size, hidden_sizes):
    """Deterministic init mirroring MLP.initialize_weights():
    weights ~ N(0, 0.02), biases = 0, PReLU alpha = 0.25 (nn.PReLU default)."""
    params = []
    prev = input_size
    sizes = list(hidden_sizes) + [output_size]
    for h in sizes:
        key, wk = jax.random.split(key)
        # PyTorch Linear weight is [out, in]; store transposed [in, out] for the kernel.
        w = 0.02 * jax.random.normal(wk, (prev, h), dtype=jnp.float32)
        b = jnp.zeros((h,), dtype=jnp.float32)
        alpha = jnp.array([0.25], dtype=jnp.float32)
        params.append((w, b, alpha))
        prev = h
    return params


def mlp_reference(params, x):
    """Pure-JAX reference for a sanity check."""
    n = len(params)
    h = x
    for i, (w, b, alpha) in enumerate(params):
        y = h @ w + b
        if i == n - 1:
            h = jax.nn.sigmoid(y)
        else:
            h = jnp.where(y > 0.0, y, alpha[0] * y)
    return h


if __name__ == "__main__":
    key = jax.random.PRNGKey(0)

    # --- small demo shapes (as in the PyTorch module) -----------------------------
    batch = 8
    input_size = 16
    hidden_sizes = [32, 16]
    output_size = 4

    key, xk, pk = jax.random.split(key, 3)
    x = jax.random.normal(xk, (batch, input_size), dtype=jnp.float32)
    params = init_mlp_params(pk, input_size, output_size, hidden_sizes)
    ref = mlp_reference(params, x)

    # Default bf16 MXU fast path (f32 accumulation + f32 bias/activations).
    out = jax.block_until_ready(mlp_forward(params, x))
    assert out.shape == (batch, output_size), out.shape
    assert jnp.allclose(out, ref, atol=2e-2, rtol=2e-2), "bf16 mismatch vs reference"

    # f32 compute path (exact parity with the reference).
    out_f32 = jax.block_until_ready(mlp_forward(params, x, compute_dtype=jnp.float32))
    assert out_f32.shape == (batch, output_size), out_f32.shape
    assert jnp.allclose(out_f32, ref, atol=1e-5, rtol=1e-5), "f32 mismatch vs reference"

    # --- aligned / multi-tile path: exercises no-pad input and >=2 grid tiles -----
    key, xk2, pk2 = jax.random.split(key, 3)
    x2 = jax.random.normal(xk2, (64, 128), dtype=jnp.float32)
    params2 = init_mlp_params(pk2, 128, 32, [256, 128])
    ref2 = mlp_reference(params2, x2)
    out2 = jax.block_until_ready(mlp_forward(params2, x2))
    assert out2.shape == (64, 32), out2.shape
    assert jnp.allclose(out2, ref2, atol=2e-2, rtol=2e-2), "bf16 multi-tile mismatch"

    print("KERNEL_OK")
</pallas_src>

<mosaic_0001>
module attributes {stable_mosaic.version = 11 : i64} {
  func.func @_mlp_fused_kernel(%arg0: i32, %arg1: memref<3xf32, #tpu.memory_space<smem>>, %arg2: memref<16x128xbf16, #tpu.memory_space<vmem>>, %arg3: memref<128x128xbf16, #tpu.memory_space<vmem>>, %arg4: memref<1x128xf32, #tpu.memory_space<vmem>>, %arg5: memref<128x128xbf16, #tpu.memory_space<vmem>>, %arg6: memref<1x128xf32, #tpu.memory_space<vmem>>, %arg7: memref<128x128xbf16, #tpu.memory_space<vmem>>, %arg8: memref<1x128xf32, #tpu.memory_space<vmem>>, %arg9: memref<16x128xf32, #tpu.memory_space<vmem>>) attributes {dimension_semantics = [#tpu.dimension_semantics<parallel>], iteration_bounds = array<i64: 1>, scalar_prefetch = 0 : i64, scratch_operands = 0 : i64, tpu.core_type = #tpu.core_type<tc>, window_params = [{transform_indices = @transform_0, window_bounds = array<i64: 3>}, {transform_indices = @transform_1, window_bounds = array<i64: 16, 128>}, {pipeline_mode = #tpu.pipeline_mode<synchronous>, transform_indices = @transform_2, window_bounds = array<i64: 128, 128>}, {pipeline_mode = #tpu.pipeline_mode<synchronous>, transform_indices = @transform_3, window_bounds = array<i64: 1, 128>}, {pipeline_mode = #tpu.pipeline_mode<synchronous>, transform_indices = @transform_4, window_bounds = array<i64: 128, 128>}, {pipeline_mode = #tpu.pipeline_mode<synchronous>, transform_indices = @transform_5, window_bounds = array<i64: 1, 128>}, {pipeline_mode = #tpu.pipeline_mode<synchronous>, transform_indices = @transform_6, window_bounds = array<i64: 128, 128>}, {pipeline_mode = #tpu.pipeline_mode<synchronous>, transform_indices = @transform_7, window_bounds = array<i64: 1, 128>}, {transform_indices = @transform_8, window_bounds = array<i64: 16, 128>}]} {
    %c0 = arith.constant 0 : index
    %c0_0 = arith.constant 0 : index
    %0 = vector.load %arg2[%c0, %c0_0] : memref<16x128xbf16, #tpu.memory_space<vmem>>, vector<16x128xbf16>
    %c0_1 = arith.constant 0 : index
    %c0_2 = arith.constant 0 : index
    %1 = vector.load %arg3[%c0_1, %c0_2] : memref<128x128xbf16, #tpu.memory_space<vmem>>, vector<128x128xbf16>
    %c0_3 = arith.constant 0 : index
    %c0_4 = arith.constant 0 : index
    %2 = vector.load %arg4[%c0_3, %c0_4] : memref<1x128xf32, #tpu.memory_space<vmem>>, vector<1x128xf32>
    %cst = arith.constant dense<0.000000e+00> : vector<16x128xf32>
    %3 = tpu.matmul %0, %1, %cst {dimension_numbers = #tpu.dot_dimension_numbers<[1], [0], [0], [1], [0, 0, 1, 1], [], []>} : vector<16x128xbf16>, vector<128x128xbf16>, vector<16x128xf32> -> vector<16x128xf32>
    %4 = vector.broadcast %2 : vector<1x128xf32> to vector<16x128xf32>
    %5 = arith.addf %3, %4 : vector<16x128xf32>
    %c0_5 = arith.constant 0 : index
    %6 = memref.load %arg1[%c0_5] : memref<3xf32, #tpu.memory_space<smem>>
    %cst_6 = arith.constant 0.000000e+00 : f32
    %7 = vector.broadcast %cst_6 : f32 to vector<16x128xf32>
    %8 = arith.cmpf ogt, %5, %7 : vector<16x128xf32>
    %9 = vector.broadcast %6 : f32 to vector<16x128xf32>
    %10 = arith.mulf %9, %5 : vector<16x128xf32>
    %11 = arith.select %8, %5, %10 : vector<16x128xi1>, vector<16x128xf32>
    %12 = arith.truncf %11 : vector<16x128xf32> to vector<16x128xbf16>
    %c0_7 = arith.constant 0 : index
    %c0_8 = arith.constant 0 : index
    %13 = vector.load %arg5[%c0_7, %c0_8] : memref<128x128xbf16, #tpu.memory_space<vmem>>, vector<128x128xbf16>
    %c0_9 = arith.constant 0 : index
    %c0_10 = arith.constant 0 : index
    %14 = vector.load %arg6[%c0_9, %c0_10] : memref<1x128xf32, #tpu.memory_space<vmem>>, vector<1x128xf32>
    %cst_11 = arith.constant dense<0.000000e+00> : vector<16x128xf32>
    %15 = tpu.matmul %12, %13, %cst_11 {dimension_numbers = #tpu.dot_dimension_numbers<[1], [0], [0], [1], [0, 0, 1, 1], [], []>} : vector<16x128xbf16>, vector<128x128xbf16>, vector<16x128xf32> -> vector<16x128xf32>
    %16 = vector.broadcast %14 : vector<1x128xf32> to vector<16x128xf32>
    %17 = arith.addf %15, %16 : vector<16x128xf32>
    %c1 = arith.constant 1 : index
    %18 = memref.load %arg1[%c1] : memref<3xf32, #tpu.memory_space<smem>>
    %cst_12 = arith.constant 0.000000e+00 : f32
    %19 = vector.broadcast %cst_12 : f32 to vector<16x128xf32>
    %20 = arith.cmpf ogt, %17, %19 : vector<16x128xf32>
    %21 = vector.broadcast %18 : f32 to vector<16x128xf32>
    %22 = arith.mulf %21, %17 : vector<16x128xf32>
    %23 = arith.select %20, %17, %22 : vector<16x128xi1>, vector<16x128xf32>
    %24 = arith.truncf %23 : vector<16x128xf32> to vector<16x128xbf16>
    %c0_13 = arith.constant 0 : index
    %c0_14 = arith.constant 0 : index
    %25 = vector.load %arg7[%c0_13, %c0_14] : memref<128x128xbf16, #tpu.memory_space<vmem>>, vector<128x128xbf16>
    %c0_15 = arith.constant 0 : index
    %c0_16 = arith.constant 0 : index
    %26 = vector.load %arg8[%c0_15, %c0_16] : memref<1x128xf32, #tpu.memory_space<vmem>>, vector<1x128xf32>
    %cst_17 = arith.constant dense<0.000000e+00> : vector<16x128xf32>
    %27 = tpu.matmul %24, %25, %cst_17 {dimension_numbers = #tpu.dot_dimension_numbers<[1], [0], [0], [1], [0, 0, 1, 1], [], []>} : vector<16x128xbf16>, vector<128x128xbf16>, vector<16x128xf32> -> vector<16x128xf32>
    %28 = vector.broadcast %26 : vector<1x128xf32> to vector<16x128xf32>
    %29 = arith.addf %27, %28 : vector<16x128xf32>
    %cst_18 = arith.constant 5.000000e-01 : f32
    %30 = vector.broadcast %cst_18 : f32 to vector<16x128xf32>
    %31 = arith.mulf %30, %29 : vector<16x128xf32>
    %32 = math.tanh %31 : vector<16x128xf32>
    %cst_19 = arith.constant 5.000000e-01 : f32
    %33 = vector.broadcast %cst_19 : f32 to vector<16x128xf32>
    %34 = arith.mulf %33, %32 : vector<16x128xf32>
    %cst_20 = arith.constant 5.000000e-01 : f32
    %35 = vector.broadcast %cst_20 : f32 to vector<16x128xf32>
    %36 = arith.addf %34, %35 : vector<16x128xf32>
    %c0_21 = arith.constant 0 : index
    %c0_22 = arith.constant 0 : index
    %37 = vector.load %arg9[%c0_21, %c0_22] : memref<16x128xf32, #tpu.memory_space<vmem>>, vector<16x128xf32>
    tpu.vector_store %arg9[%c0_21, %c0_22], %36 {strides = array<i32>} : memref<16x128xf32, #tpu.memory_space<vmem>>, vector<16x128xf32>,
    return
  }
  func.func @transform_0(%arg0: i32) -> i32 {
    %c0_i32 = arith.constant 0 : i32
    %c0_i32_0 = arith.constant 0 : i32
    return %c0_i32 : i32
  }
  func.func @transform_1(%arg0: i32) -> (i32, i32) {
    %c0_i32 = arith.constant 0 : i32
    %c0_i32_0 = arith.constant 0 : i32
    return %arg0, %c0_i32 : i32, i32
  }
  func.func @transform_2(%arg0: i32) -> (i32, i32) {
    %c0_i32 = arith.constant 0 : i32
    %c0_i32_0 = arith.constant 0 : i32
    %c0_i32_1 = arith.constant 0 : i32
    return %c0_i32, %c0_i32_0 : i32, i32
  }
  func.func @transform_3(%arg0: i32) -> (i32, i32) {
    %c0_i32 = arith.constant 0 : i32
    %c0_i32_0 = arith.constant 0 : i32
    %c0_i32_1 = arith.constant 0 : i32
    return %c0_i32, %c0_i32_0 : i32, i32
  }
  func.func @transform_4(%arg0: i32) -> (i32, i32) {
    %c0_i32 = arith.constant 0 : i32
    %c0_i32_0 = arith.constant 0 : i32
    %c0_i32_1 = arith.constant 0 : i32
    return %c0_i32, %c0_i32_0 : i32, i32
  }
  func.func @transform_5(%arg0: i32) -> (i32, i32) {
    %c0_i32 = arith.constant 0 : i32
    %c0_i32_0 = arith.constant 0 : i32
    %c0_i32_1 = arith.constant 0 : i32
    return %c0_i32, %c0_i32_0 : i32, i32
  }
  func.func @transform_6(%arg0: i32) -> (i32, i32) {
    %c0_i32 = arith.constant 0 : i32
    %c0_i32_0 = arith.constant 0 : i32
    %c0_i32_1 = arith.constant 0 : i32
    return %c0_i32, %c0_i32_0 : i32, i32
  }
  func.func @transform_7(%arg0: i32) -> (i32, i32) {
    %c0_i32 = arith.constant 0 : i32
    %c0_i32_0 = arith.constant 0 : i32
    %c0_i32_1 = arith.constant 0 : i32
    return %c0_i32, %c0_i32_0 : i32, i32
  }
  func.func @transform_8(%arg0: i32) -> (i32, i32) {
    %c0_i32 = arith.constant 0 : i32
    %c0_i32_0 = arith.constant 0 : i32
    return %arg0, %c0_i32 : i32, i32
  }
}

module attributes {stable_mosaic.version = 11 : i64} {
  func.func @_mlp_fused_kernel(%arg0: i32, %arg1: memref<3xf32, #tpu.memory_space<smem>>, %arg2: memref<16x128xbf16, #tpu.memory_space<vmem>>, %arg3: memref<128x128xbf16, #tpu.memory_space<vmem>>, %arg4: memref<1x128xf32, #tpu.memory_space<vmem>>, %arg5: memref<128x128xbf16, #tpu.memory_space<vmem>>, %arg6: memref<1x128xf32, #tpu.memory_space<vmem>>, %arg7: memref<128x128xbf16, #tpu.memory_space<vmem>>, %arg8: memref<1x128xf32, #tpu.memory_space<vmem>>, %arg9: memref<16x128xf32, #tpu.memory_space<vmem>>) attributes {dimension_semantics = [#tpu.dimension_semantics<parallel>], iteration_bounds = array<i64: 1>, scalar_prefetch = 0 : i64, scratch_operands = 0 : i64, tpu.core_type = #tpu.core_type<tc>, window_params = [{transform_indices = @transform_0, window_bounds = array<i64: 3>}, {transform_indices = @transform_1, window_bounds = array<i64: 16, 128>}, {pipeline_mode = #tpu.pipeline_mode<synchronous>, transform_indices = @transform_2, window_bounds = array<i64: 128, 128>}, {pipeline_mode = #tpu.pipeline_mode<synchronous>, transform_indices = @transform_3, window_bounds = array<i64: 1, 128>}, {pipeline_mode = #tpu.pipeline_mode<synchronous>, transform_indices = @transform_4, window_bounds = array<i64: 128, 128>}, {pipeline_mode = #tpu.pipeline_mode<synchronous>, transform_indices = @transform_5, window_bounds = array<i64: 1, 128>}, {pipeline_mode = #tpu.pipeline_mode<synchronous>, transform_indices = @transform_6, window_bounds = array<i64: 128, 128>}, {pipeline_mode = #tpu.pipeline_mode<synchronous>, transform_indices = @transform_7, window_bounds = array<i64: 1, 128>}, {transform_indices = @transform_8, window_bounds = array<i64: 16, 128>}]} {
    %c0 = arith.constant 0 : index
    %c0_0 = arith.constant 0 : index
    %0 = vector.load %arg2[%c0, %c0_0] : memref<16x128xbf16, #tpu.memory_space<vmem>>, vector<16x128xbf16>
    %c0_1 = arith.constant 0 : index
    %c0_2 = arith.constant 0 : index
    %1 = vector.load %arg3[%c0_1, %c0_2] : memref<128x128xbf16, #tpu.memory_space<vmem>>, vector<128x128xbf16>
    %c0_3 = arith.constant 0 : index
    %c0_4 = arith.constant 0 : index
    %2 = vector.load %arg4[%c0_3, %c0_4] : memref<1x128xf32, #tpu.memory_space<vmem>>, vector<1x128xf32>
    %cst = arith.constant dense<0.000000e+00> : vector<16x128xf32>
    %3 = tpu.matmul %0, %1, %cst {dimension_numbers = #tpu.dot_dimension_numbers<[1], [0], [0], [1], [0, 0, 1, 1], [], []>} : vector<16x128xbf16>, vector<128x128xbf16>, vector<16x128xf32> -> vector<16x128xf32>
    %4 = vector.broadcast %2 : vector<1x128xf32> to vector<16x128xf32>
    %5 = arith.addf %3, %4 : vector<16x128xf32>
    %c0_5 = arith.constant 0 : index
    %6 = memref.load %arg1[%c0_5] : memref<3xf32, #tpu.memory_space<smem>>
    %cst_6 = arith.constant 0.000000e+00 : f32
    %7 = vector.broadcast %cst_6 : f32 to vector<16x128xf32>
    %8 = arith.cmpf ogt, %5, %7 : vector<16x128xf32>
    %9 = vector.broadcast %6 : f32 to vector<16x128xf32>
    %10 = arith.mulf %9, %5 : vector<16x128xf32>
    %11 = arith.select %8, %5, %10 : vector<16x128xi1>, vector<16x128xf32>
    %12 = arith.truncf %11 : vector<16x128xf32> to vector<16x128xbf16>
    %c0_7 = arith.constant 0 : index
    %c0_8 = arith.constant 0 : index
    %13 = vector.load %arg5[%c0_7, %c0_8] : memref<128x128xbf16, #tpu.memory_space<vmem>>, vector<128x128xbf16>
    %c0_9 = arith.constant 0 : index
    %c0_10 = arith.constant 0 : index
    %14 = vector.load %arg6[%c0_9, %c0_10] : memref<1x128xf32, #tpu.memory_space<vmem>>, vector<1x128xf32>
    %cst_11 = arith.constant dense<0.000000e+00> : vector<16x128xf32>
    %15 = tpu.matmul %12, %13, %cst_11 {dimension_numbers = #tpu.dot_dimension_numbers<[1], [0], [0], [1], [0, 0, 1, 1], [], []>} : vector<16x128xbf16>, vector<128x128xbf16>, vector<16x128xf32> -> vector<16x128xf32>
    %16 = vector.broadcast %14 : vector<1x128xf32> to vector<16x128xf32>
    %17 = arith.addf %15, %16 : vector<16x128xf32>
    %c1 = arith.constant 1 : index
    %18 = memref.load %arg1[%c1] : memref<3xf32, #tpu.memory_space<smem>>
    %cst_12 = arith.constant 0.000000e+00 : f32
    %19 = vector.broadcast %cst_12 : f32 to vector<16x128xf32>
    %20 = arith.cmpf ogt, %17, %19 : vector<16x128xf32>
    %21 = vector.broadcast %18 : f32 to vector<16x128xf32>
    %22 = arith.mulf %21, %17 : vector<16x128xf32>
    %23 = arith.select %20, %17, %22 : vector<16x128xi1>, vector<16x128xf32>
    %24 = arith.truncf %23 : vector<16x128xf32> to vector<16x128xbf16>
    %c0_13 = arith.constant 0 : index
    %c0_14 = arith.constant 0 : index
    %25 = vector.load %arg7[%c0_13, %c0_14] : memref<128x128xbf16, #tpu.memory_space<vmem>>, vector<128x128xbf16>
    %c0_15 = arith.constant 0 : index
    %c0_16 = arith.constant 0 : index
    %26 = vector.load %arg8[%c0_15, %c0_16] : memref<1x128xf32, #tpu.memory_space<vmem>>, vector<1x128xf32>
    %cst_17 = arith.constant dense<0.000000e+00> : vector<16x128xf32>
    %27 = tpu.matmul %24, %25, %cst_17 {dimension_numbers = #tpu.dot_dimension_numbers<[1], [0], [0], [1], [0, 0, 1, 1], [], []>} : vector<16x128xbf16>, vector<128x128xbf16>, vector<16x128xf32> -> vector<16x128xf32>
    %28 = vector.broadcast %26 : vector<1x128xf32> to vector<16x128xf32>
    %29 = arith.addf %27, %28 : vector<16x128xf32>
    %cst_18 = arith.constant 5.000000e-01 : f32
    %30 = vector.broadcast %cst_18 : f32 to vector<16x128xf32>
    %31 = arith.mulf %30, %29 : vector<16x128xf32>
    %32 = math.tanh %31 : vector<16x128xf32>
    %cst_19 = arith.constant 5.000000e-01 : f32
    %33 = vector.broadcast %cst_19 : f32 to vector<16x128xf32>
    %34 = arith.mulf %33, %32 : vector<16x128xf32>
    %cst_20 = arith.constant 5.000000e-01 : f32
    %35 = vector.broadcast %cst_20 : f32 to vector<16x128xf32>
    %36 = arith.addf %34, %35 : vector<16x128xf32>
    %c0_21 = arith.constant 0 : index
    %c0_22 = arith.constant 0 : index
    %37 = vector.load %arg9[%c0_21, %c0_22] : memref<16x128xf32, #tpu.memory_space<vmem>>, vector<16x128xf32>
    tpu.vector_store %arg9[%c0_21, %c0_22], %36 {strides = array<i32>} : memref<16x128xf32, #tpu.memory_space<vmem>>, vector<16x128xf32>,
    return
  }
  func.func @transform_0(%arg0: i32) -> i32 {
    %c0_i32 = arith.constant 0 : i32
    %c0_i32_0 = arith.constant 0 : i32
    return %c0_i32 : i32
  }
  func.func @transform_1(%arg0: i32) -> (i32, i32) {
    %c0_i32 = arith.constant 0 : i32
    %c0_i32_0 = arith.constant 0 : i32
    return %arg0, %c0_i32 : i32, i32
  }
  func.func @transform_2(%arg0: i32) -> (i32, i32) {
    %c0_i32 = arith.constant 0 : i32
    %c0_i32_0 = arith.constant 0 : i32
    %c0_i32_1 = arith.constant 0 : i32
    return %c0_i32, %c0_i32_0 : i32, i32
  }
  func.func @transform_3(%arg0: i32) -> (i32, i32) {
    %c0_i32 = arith.constant 0 : i32
    %c0_i32_0 = arith.constant 0 : i32
    %c0_i32_1 = arith.constant 0 : i32
    return %c0_i32, %c0_i32_0 : i32, i32
  }
  func.func @transform_4(%arg0: i32) -> (i32, i32) {
    %c0_i32 = arith.constant 0 : i32
    %c0_i32_0 = arith.constant 0 : i32
    %c0_i32_1 = arith.constant 0 : i32
    return %c0_i32, %c0_i32_0 : i32, i32
  }
  func.func @transform_5(%arg0: i32) -> (i32, i32) {
    %c0_i32 = arith.constant 0 : i32
    %c0_i32_0 = arith.constant 0 : i32
    %c0_i32_1 = arith.constant 0 : i32
    return %c0_i32, %c0_i32_0 : i32, i32
  }
  func.func @transform_6(%arg0: i32) -> (i32, i32) {
    %c0_i32 = arith.constant 0 : i32
    %c0_i32_0 = arith.constant 0 : i32
    %c0_i32_1 = arith.constant 0 : i32
    return %c0_i32, %c0_i32_0 : i32, i32
  }
  func.func @transform_7(%arg0: i32) -> (i32, i32) {
    %c0_i32 = arith.constant 0 : i32
    %c0_i32_0 = arith.constant 0 : i32
    %c0_i32_1 = arith.constant 0 : i32
    return %c0_i32, %c0_i32_0 : i32, i32
  }
  func.func @transform_8(%arg0: i32) -> (i32, i32) {
    %c0_i32 = arith.constant 0 : i32
    %c0_i32_0 = arith.constant 0 : i32
    return %arg0, %c0_i32 : i32, i32
  }
}

</mosaic_0001>

<llo_original>
// kernel: tpu_custom_call.1
$region0: #{tpu_custom_call.1}
  #allocation0 [shape = 'u32[]', space=smem, size = 0x4, offset = 0x4, fixed_abs, tag = 'smem constant byte address 0x4 - core index']
  #allocation1 [shape = 'u32[72,128]{1,0:T(1,128)}', space=vmem, size = 0x9000, scoped, tag = 'internal scratch']
  %s0 = inlined_call_operand.hbm [shape: f32[3], index: 0, kind: input, shape index: {}]
  %s1 = inlined_call_operand.hbm [shape: bf16[16,128], index: 1, kind: input, shape index: {}]
  %s2 = inlined_call_operand.hbm [shape: bf16[128,128], index: 2, kind: input, shape index: {}]
  %s3 = inlined_call_operand.vmem [shape: f32[1,128], index: 3, kind: input, shape index: {}]
  %s4 = inlined_call_operand.hbm [shape: bf16[128,128], index: 4, kind: input, shape index: {}]
  %s5 = inlined_call_operand.vmem [shape: f32[1,128], index: 5, kind: input, shape index: {}]
  %s6 = inlined_call_operand.hbm [shape: bf16[128,128], index: 6, kind: input, shape index: {}]
  %s7 = inlined_call_operand.vmem [shape: f32[1,128], index: 7, kind: input, shape index: {}]
  %s8 = inlined_call_operand.hbm [shape: f32[16,128], index: 8, kind: output, shape index: {}]
  %s9 = sld [smem:[#allocation0]]
  $region62: #{tpu_custom_call.1} parent=0
    _
  %s11 = ssub.s32 1, %s9
  %s12 = scalar_select 0, %s11, %s9
  $region1: #{tpu_custom_call.1} parent=0
    #allocation2 [shape = 'u8[512]{0}', space=smem, size = 0x200, scoped, tag = 'input window, operand 0, single buffered']
    #allocation3 [shape = 's32[1]{0}', space=sflag, size = 0x4, scoped, tag = 'scoped memory for tpu_custom_call.1']
    #allocation4 [shape = 's32[1]{0}', space=sflag, size = 0x4, scoped, tag = 'scoped memory for tpu_custom_call.1']
    #allocation5 [shape = 's32[1]{0}', space=sflag, size = 0x4, scoped, tag = 'scoped memory for tpu_custom_call.1']
    #allocation6 [shape = 'u8[4096]{0}', space=vmem, size = 0x1000, scoped, tag = 'input window, operand 1, single buffered']
    #allocation7 [shape = 'u8[32768]{0}', space=vmem, size = 0x8000, scoped, tag = 'input window, operand 2, single buffered']
    #allocation8 [shape = 's32[1]{0}', space=sflag, size = 0x4, scoped, tag = 'scoped memory for tpu_custom_call.1']
    #allocation9 [shape = 'u8[32768]{0}', space=vmem, size = 0x8000, scoped, tag = 'input window, operand 4, single buffered']
    #allocation10 [shape = 'u8[32768]{0}', space=vmem, size = 0x8000, scoped, tag = 'input window, operand 6, single buffered']
    #allocation11 [shape = 's32[1]{0}', space=sflag, size = 0x4, scoped, tag = 'scoped memory for tpu_custom_call.1']
    #allocation12 [shape = 'u8[8192]{0}', space=vmem, size = 0x2000, scoped, tag = 'output window, operand 0, single buffered']
    %13 = vsyncpa [#allocation5], 0
    %14 = vsyncpa [#allocation3], 0
    %15 = vsyncpa [#allocation8], 0
    %16 = vsyncpa [#allocation11], 0
    %17 = vsyncpa [#allocation4], 0
    // Predicated region
    $region2: #{tpu_custom_call.1} parent=1 // pred_check
      _
    $region3: #{tpu_custom_call.1} parent=1 // pred_check_branch
      %19 = sbr.rel (0) target = $region5
    $region4: #{tpu_custom_call.1} parent=1 // pred_region
      %21 = vsyncadd [#allocation5], 0
      %s23 = sshll.u32 %s0, 4
      %s24 = int_to_ptr.hbm [resolvable:$true] %s23
      %26 = dma.hbm_to_smem %s24, 16, [#allocation2], [#allocation5]
    $region5: #{tpu_custom_call.1} parent=1 // pred_fallthru
      _
    // Predicated region
    $region6: #{tpu_custom_call.1} parent=1 // pred_check
      _
    $region7: #{tpu_custom_call.1} parent=1 // pred_check_branch
      %28 = sbr.rel (0) target = $region9
    $region8: #{tpu_custom_call.1} parent=1 // pred_region
      %30 = vsyncadd [#allocation3], 0
      %s31 = sshll.u32 %s1, 4
      %s32 = int_to_ptr.hbm [resolvable:$true] %s31
      %s33 = sshll.u32 [#allocation6], 4
      %s34 = int_to_ptr.vmem [resolvable:$true] %s33
      %39 = dma.hbm_to_vmem [thread:$0]  %s32, 128, %s34, [#allocation3], 64, 64, 4
    $region9: #{tpu_custom_call.1} parent=1 // pred_fallthru
      _
    // Predicated region
    $region10: #{tpu_custom_call.1} parent=1 // pred_check
      _
    $region11: #{tpu_custom_call.1} parent=1 // pred_check_branch
      %41 = sbr.rel (0) target = $region13
    $region12: #{tpu_custom_call.1} parent=1 // pred_region
      %43 = vsyncadd [#allocation8], 0
      %s44 = sshll.u32 %s2, 4
      %s45 = int_to_ptr.hbm [resolvable:$true] %s44
      %s46 = sshll.u32 [#allocation7], 4
      %s47 = int_to_ptr.vmem [resolvable:$true] %s46
      %52 = dma.hbm_to_vmem [thread:$0]  %s45, 1024, %s47, [#allocation8], 64, 64, 4
    $region13: #{tpu_custom_call.1} parent=1 // pred_fallthru
      _
    // Predicated region
    $region14: #{tpu_custom_call.1} parent=1 // pred_check
      _
    $region15: #{tpu_custom_call.1} parent=1 // pred_check_branch
      %54 = sbr.rel (0) target = $region17
    $region16: #{tpu_custom_call.1} parent=1 // pred_region
      _
    $region17: #{tpu_custom_call.1} parent=1 // pred_fallthru
      _
    // Predicated region
    $region18: #{tpu_custom_call.1} parent=1 // pred_check
      _
    $region19: #{tpu_custom_call.1} parent=1 // pred_check_branch
      %56 = sbr.rel (0) target = $region21
    $region20: #{tpu_custom_call.1} parent=1 // pred_region
      %58 = vsyncadd [#allocation8], 0
      %s59 = sshll.u32 %s4, 4
      %s60 = int_to_ptr.hbm [resolvable:$true] %s59
      %s61 = sshll.u32 [#allocation9], 4
      %s62 = int_to_ptr.vmem [resolvable:$true] %s61
      %67 = dma.hbm_to_vmem [thread:$0]  %s60, 1024, %s62, [#allocation8], 64, 64, 4
    $region21: #{tpu_custom_call.1} parent=1 // pred_fallthru
      _
    // Predicated region
    $region22: #{tpu_custom_call.1} parent=1 // pred_check
      _
    $region23: #{tpu_custom_call.1} parent=1 // pred_check_branch
      %69 = sbr.rel (0) target = $region25
    $region24: #{tpu_custom_call.1} parent=1 // pred_region
      _
    $region25: #{tpu_custom_call.1} parent=1 // pred_fallthru
      _
    // Predicated region
    $region26: #{tpu_custom_call.1} parent=1 // pred_check
      _
    $region27: #{tpu_custom_call.1} parent=1 // pred_check_branch
      %71 = sbr.rel (0) target = $region29
    $region28: #{tpu_custom_call.1} parent=1 // pred_region
      %73 = vsyncadd [#allocation11], 0
      %s74 = sshll.u32 %s6, 4
      %s75 = int_to_ptr.hbm [resolvable:$true] %s74
      %s76 = sshll.u32 [#allocation10], 4
      %s77 = int_to_ptr.vmem [resolvable:$true] %s76
      %82 = dma.hbm_to_vmem [thread:$0]  %s75, 1024, %s77, [#allocation11], 64, 64, 4
    $region29: #{tpu_custom_call.1} parent=1 // pred_fallthru
      _
    // Predicated region
    $region30: #{tpu_custom_call.1} parent=1 // pred_check
      _
    $region31: #{tpu_custom_call.1} parent=1 // pred_check_branch
      %84 = sbr.rel (0) target = $region33
    $region32: #{tpu_custom_call.1} parent=1 // pred_region
      _
    $region33: #{tpu_custom_call.1} parent=1 // pred_fallthru
      _
    // Predicated region
    $region34: #{tpu_custom_call.1} parent=1 // pred_check
      _
    $region35: #{tpu_custom_call.1} parent=1 // pred_check_branch
      %86 = sbr.rel (0) target = $region37
    $region36: #{tpu_custom_call.1} parent=1 // pred_region
      %88 = dma.done [#allocation5], 16
    $region37: #{tpu_custom_call.1} parent=1 // pred_fallthru
      _
    // Predicated region
    $region38: #{tpu_custom_call.1} parent=1 // pred_check
      _
    $region39: #{tpu_custom_call.1} parent=1 // pred_check_branch
      %90 = sbr.rel (0) target = $region41
    $region40: #{tpu_custom_call.1} parent=1 // pred_region
      %92 = dma.done [#allocation3], 128
    $region41: #{tpu_custom_call.1} parent=1 // pred_fallthru
      _
    // Predicated region
    $region42: #{tpu_custom_call.1} parent=1 // pred_check
      _
    $region43: #{tpu_custom_call.1} parent=1 // pred_check_branch
      %94 = sbr.rel (0) target = $region45
    $region44: #{tpu_custom_call.1} parent=1 // pred_region
      %96 = dma.done [#allocation8], 1024
    $region45: #{tpu_custom_call.1} parent=1 // pred_fallthru
      _
    // Predicated region
    $region46: #{tpu_custom_call.1} parent=1 // pred_check
      _
    $region47: #{tpu_custom_call.1} parent=1 // pred_check_branch
      %98 = sbr.rel (0) target = $region49
    $region48: #{tpu_custom_call.1} parent=1 // pred_region
      %100 = dma.done [#allocation8], 1024
    $region49: #{tpu_custom_call.1} parent=1 // pred_fallthru
      _
    // Predicated region
    $region50: #{tpu_custom_call.1} parent=1 // pred_check
      _
    $region51: #{tpu_custom_call.1} parent=1 // pred_check_branch
      %102 = sbr.rel (0) target = $region53
    $region52: #{tpu_custom_call.1} parent=1 // pred_region
      %104 = dma.done [#allocation11], 1024
    $region53: #{tpu_custom_call.1} parent=1 // pred_fallthru
      _
    %105 = sfence
    %v106 = vld [vmem:[#allocation6] sm:$0xf]
    %v107 = vld [vmem:[#allocation6 + $0x4] sm:$0xf]
    %v108 = vld [vmem:[#allocation7] sm:$0xf]
    %v109 = vld [vmem:[#allocation7 + $0x4] sm:$0xf]
    %v110 = vld [vmem:[#allocation7 + $0x8] sm:$0xf]
    %v111 = vld [vmem:[#allocation7 + $0xc] sm:$0xf]
    %v112 = vld [vmem:[#allocation7 + $0x10] sm:$0xf]
    %v113 = vld [vmem:[#allocation7 + $0x14] sm:$0xf]
    %v114 = vld [vmem:[#allocation7 + $0x18] sm:$0xf]
    %v115 = vld [vmem:[#allocation7 + $0x1c] sm:$0xf]
    %v116 = vld [vmem:[#allocation7 + $0x20] sm:$0xf]
    %v117 = vld [vmem:[#allocation7 + $0x24] sm:$0xf]
    %v118 = vld [vmem:[#allocation7 + $0x28] sm:$0xf]
    %v119 = vld [vmem:[#allocation7 + $0x2c] sm:$0xf]
    %v120 = vld [vmem:[#allocation7 + $0x30] sm:$0xf]
    %v121 = vld [vmem:[#allocation7 + $0x34] sm:$0xf]
    %v122 = vld [vmem:[#allocation7 + $0x38] sm:$0xf]
    %v123 = vld [vmem:[#allocation7 + $0x3c] sm:$0xf]
    %v124 = vld [vmem:[%s3] sm:$0x1]
    %v126 = vperm.slane %v124, 0
    %v130 = vunpack.c.l.b16 %v106
    %v131 = vunpack.c.l.b16 %v107
    %v132 = vpack.c.b16 %v131, %v130
    %v150 = vunpack.c.l.b16 %v108
    %v151 = vunpack.c.l.b16 %v109
    %v152 = vunpack.c.l.b16 %v110
    %v153 = vunpack.c.l.b16 %v111
    %v154 = vunpack.c.l.b16 %v112
    %v155 = vunpack.c.l.b16 %v113
    %v156 = vunpack.c.l.b16 %v114
    %v157 = vunpack.c.l.b16 %v115
    %v158 = vunpack.c.l.b16 %v116
    %v159 = vunpack.c.l.b16 %v117
    %v160 = vunpack.c.l.b16 %v118
    %v161 = vunpack.c.l.b16 %v119
    %v162 = vunpack.c.l.b16 %v120
    %v163 = vunpack.c.l.b16 %v121
    %v164 = vunpack.c.l.b16 %v122
    %v165 = vunpack.c.l.b16 %v123
    %v166 = vpack.c.b16 %v151, %v150
    %v167 = vpack.c.b16 %v153, %v152
    %v168 = vpack.c.b16 %v155, %v154
    %v169 = vpack.c.b16 %v157, %v156
    %v170 = vpack.c.b16 %v159, %v158
    %v171 = vpack.c.b16 %v161, %v160
    %v172 = vpack.c.b16 %v163, %v162
    %v173 = vpack.c.b16 %v165, %v164
    %182 = vmatpush.bf16.msra.mxu0 %v173
    %183 = vmatpush.bf16.msra.mxu0 %v172
    %184 = vmatpush.bf16.msra.mxu0 %v171
    %185 = vmatpush.bf16.msra.mxu0 %v170
    %186 = vmatpush.bf16.msra.mxu0 %v169
    %187 = vmatpush.bf16.msra.mxu0 %v168
    %188 = vmatpush.bf16.msra.mxu0 %v167
    %189 = vmatpush.bf16.msra.mxu0 %v166
    %190 = vmatmul.bf16.gmra.mxu0 %v132
    %v191 = vpop.f32.mrf.mxu0
    %v192 = vadd.f32 %v126, %v191
    %v193 = vpop.f32.mrf.mxu0
    %v194 = vadd.f32 %v126, %v193
    %195 = vdwg.mxu0
    %s196 = sld [smem:[#allocation2]]
    %vm197 = vcmp.gt.f32.partialorder %v192, 0.0
    %vm198 = vcmp.gt.f32.partialorder %v194, 0.0
    %v199 = vstv %s196
    %v200 = vmul.f32 %v199, %v192
    %v201 = vmul.f32 %v199, %v194
    %v202 = vsel %vm197, %v192, %v200
    %v203 = vsel %vm198, %v194, %v201
    %v204 = vpack.c.bf16 %v203, %v202
    %v205 = vld [vmem:[#allocation9] sm:$0xf]
    %v206 = vld [vmem:[#allocation9 + $0x4] sm:$0xf]
    %v207 = vld [vmem:[#allocation9 + $0x8] sm:$0xf]
    %v208 = vld [vmem:[#allocation9 + $0xc] sm:$0xf]
    %v209 = vld [vmem:[#allocation9 + $0x10] sm:$0xf]
    %v210 = vld [vmem:[#allocation9 + $0x14] sm:$0xf]
    %v211 = vld [vmem:[#allocation9 + $0x18] sm:$0xf]
    %v212 = vld [vmem:[#allocation9 + $0x1c] sm:$0xf]
    %v213 = vld [vmem:[#allocation9 + $0x20] sm:$0xf]
    %v214 = vld [vmem:[#allocation9 + $0x24] sm:$0xf]
    %v215 = vld [vmem:[#allocation9 + $0x28] sm:$0xf]
    %v216 = vld [vmem:[#allocation9 + $0x2c] sm:$0xf]
    %v217 = vld [vmem:[#allocation9 + $0x30] sm:$0xf]
    %v218 = vld [vmem:[#allocation9 + $0x34] sm:$0xf]
    %v219 = vld [vmem:[#allocation9 + $0x38] sm:$0xf]
    %v220 = vld [vmem:[#allocation9 + $0x3c] sm:$0xf]
    %v221 = vld [vmem:[%s5] sm:$0x1]
    %v223 = vperm.slane %v221, 0
    %v241 = vunpack.c.l.b16 %v205
    %v242 = vunpack.c.l.b16 %v206
    %v243 = vunpack.c.l.b16 %v207
    %v244 = vunpack.c.l.b16 %v208
    %v245 = vunpack.c.l.b16 %v209
    %v246 = vunpack.c.l.b16 %v210
    %v247 = vunpack.c.l.b16 %v211
    %v248 = vunpack.c.l.b16 %v212
    %v249 = vunpack.c.l.b16 %v213
    %v250 = vunpack.c.l.b16 %v214
    %v251 = vunpack.c.l.b16 %v215
    %v252 = vunpack.c.l.b16 %v216
    %v253 = vunpack.c.l.b16 %v217
    %v254 = vunpack.c.l.b16 %v218
    %v255 = vunpack.c.l.b16 %v219
    %v256 = vunpack.c.l.b16 %v220
    %v257 = vpack.c.b16 %v242, %v241
    %v258 = vpack.c.b16 %v244, %v243
    %v259 = vpack.c.b16 %v246, %v245
    %v260 = vpack.c.b16 %v248, %v247
    %v261 = vpack.c.b16 %v250, %v249
    %v262 = vpack.c.b16 %v252, %v251
    %v263 = vpack.c.b16 %v254, %v253
    %v264 = vpack.c.b16 %v256, %v255
    %273 = vmatpush.bf16.msra.mxu0 %v264
    %274 = vmatpush.bf16.msra.mxu0 %v263
    %275 = vmatpush.bf16.msra.mxu0 %v262
    %276 = vmatpush.bf16.msra.mxu0 %v261
    %277 = vmatpush.bf16.msra.mxu0 %v260
    %278 = vmatpush.bf16.msra.mxu0 %v259
    %279 = vmatpush.bf16.msra.mxu0 %v258
    %280 = vmatpush.bf16.msra.mxu0 %v257
    %281 = vmatmul.bf16.gmra.mxu0 %v204
    %v282 = vpop.f32.mrf.mxu0
    %v283 = vadd.f32 %v223, %v282
    %v284 = vpop.f32.mrf.mxu0
    %v285 = vadd.f32 %v223, %v284
    %286 = vdwg.mxu0
    %s287 = sld [smem:[#allocation2 + $0x1]]
    %vm288 = vcmp.gt.f32.partialorder %v283, 0.0
    %vm289 = vcmp.gt.f32.partialorder %v285, 0.0
    %v290 = vstv %s287
    %v291 = vmul.f32 %v290, %v283
    %v292 = vmul.f32 %v290, %v285
    %v293 = vsel %vm288, %v283, %v291
    %v294 = vsel %vm289, %v285, %v292
    %v295 = vpack.c.bf16 %v294, %v293
    %v296 = vld [vmem:[#allocation10] sm:$0xf]
    %v297 = vld [vmem:[#allocation10 + $0x4] sm:$0xf]
    %v298 = vld [vmem:[#allocation10 + $0x8] sm:$0xf]
    %v299 = vld [vmem:[#allocation10 + $0xc] sm:$0xf]
    %v300 = vld [vmem:[#allocation10 + $0x10] sm:$0xf]
    %v301 = vld [vmem:[#allocation10 + $0x14] sm:$0xf]
    %v302 = vld [vmem:[#allocation10 + $0x18] sm:$0xf]
    %v303 = vld [vmem:[#allocation10 + $0x1c] sm:$0xf]
    %v304 = vld [vmem:[#allocation10 + $0x20] sm:$0xf]
    %v305 = vld [vmem:[#allocation10 + $0x24] sm:$0xf]
    %v306 = vld [vmem:[#allocation10 + $0x28] sm:$0xf]
    %v307 = vld [vmem:[#allocation10 + $0x2c] sm:$0xf]
    %v308 = vld [vmem:[#allocation10 + $0x30] sm:$0xf]
    %v309 = vld [vmem:[#allocation10 + $0x34] sm:$0xf]
    %v310 = vld [vmem:[#allocation10 + $0x38] sm:$0xf]
    %v311 = vld [vmem:[#allocation10 + $0x3c] sm:$0xf]
    %v312 = vld [vmem:[%s7] sm:$0x1]
    %v314 = vperm.slane %v312, 0
    %v332 = vunpack.c.l.b16 %v296
    %v333 = vunpack.c.l.b16 %v297
    %v334 = vunpack.c.l.b16 %v298
    %v335 = vunpack.c.l.b16 %v299
    %v336 = vunpack.c.l.b16 %v300
    %v337 = vunpack.c.l.b16 %v301
    %v338 = vunpack.c.l.b16 %v302
    %v339 = vunpack.c.l.b16 %v303
    %v340 = vunpack.c.l.b16 %v304
    %v341 = vunpack.c.l.b16 %v305
    %v342 = vunpack.c.l.b16 %v306
    %v343 = vunpack.c.l.b16 %v307
    %v344 = vunpack.c.l.b16 %v308
    %v345 = vunpack.c.l.b16 %v309
    %v346 = vunpack.c.l.b16 %v310
    %v347 = vunpack.c.l.b16 %v311
    %v348 = vpack.c.b16 %v333, %v332
    %v349 = vpack.c.b16 %v335, %v334
    %v350 = vpack.c.b16 %v337, %v336
    %v351 = vpack.c.b16 %v339, %v338
    %v352 = vpack.c.b16 %v341, %v340
    %v353 = vpack.c.b16 %v343, %v342
    %v354 = vpack.c.b16 %v345, %v344
    %v355 = vpack.c.b16 %v347, %v346
    %364 = vmatpush.bf16.msra.mxu0 %v355
    %365 = vmatpush.bf16.msra.mxu0 %v354
    %366 = vmatpush.bf16.msra.mxu0 %v353
    %367 = vmatpush.bf16.msra.mxu0 %v352
    %368 = vmatpush.bf16.msra.mxu0 %v351
    %369 = vmatpush.bf16.msra.mxu0 %v350
    %370 = vmatpush.bf16.msra.mxu0 %v349
    %371 = vmatpush.bf16.msra.mxu0 %v348
    %372 = vmatmul.bf16.gmra.mxu0 %v295
    %v373 = vpop.f32.mrf.mxu0
    %v374 = vadd.f32 %v314, %v373
    %v375 = vpop.f32.mrf.mxu0
    %v376 = vadd.f32 %v314, %v375
    %377 = vdwg.mxu0
    %v378 = vmul.f32 %v374, 0.5
    %v379 = vmul.f32 %v376, 0.5
    %v380 = vtanh.pop %v378
    %v381 = vtanh.pop %v379
    %v382 = vmul.f32 %v380, 0.5
    %v383 = vmul.f32 %v381, 0.5
    %v384 = vadd.f32 %v382, 0.5
    %v385 = vadd.f32 %v383, 0.5
    %386 = vst [vmem:[#allocation12] sm:$0xff] %v384
    %387 = vst [vmem:[#allocation12 + $0x8] sm:$0xff] %v385
    // Predicated region
    $region54: #{tpu_custom_call.1} parent=1 // pred_check
      _
    $region55: #{tpu_custom_call.1} parent=1 // pred_check_branch
      %389 = sbr.rel (0) target = $region57
    $region56: #{tpu_custom_call.1} parent=1 // pred_region
      %391 = vsyncadd [#allocation4], 0
      %s392 = sshll.u32 [#allocation12], 4
      %s393 = int_to_ptr.vmem [resolvable:$true] %s392
      %s394 = sshll.u32 %s8, 4
      %s395 = int_to_ptr.hbm [resolvable:$true] %s394
      %400 = dma.vmem_to_hbm [thread:$0]  %s393, 256, %s395, [#allocation4], 128, 128, 8
    $region57: #{tpu_custom_call.1} parent=1 // pred_fallthru
      _
    // Predicated region
    $region58: #{tpu_custom_call.1} parent=1 // pred_check
      _
    $region59: #{tpu_custom_call.1} parent=1 // pred_check_branch
      %402 = sbr.rel (0) target = $region61
    $region60: #{tpu_custom_call.1} parent=1 // pred_region
      %404 = dma.done [#allocation4], 256
    $region61: #{tpu_custom_call.1} parent=1 // pred_fallthru
      _
    %405 = vsyncpa [#allocation3], 1
    %406 = vsyncpa [#allocation8], 1
    %407 = vsyncpa [#allocation11], 1
    %408 = vsyncpa [#allocation4], 1
    %409 = vsyncpa [#allocation5], 1

// kernel: tpu_custom_call.1
$region0: #{tpu_custom_call.1}
  #allocation0 [shape = 'u32[]', space=smem, size = 0x4, offset = 0x4, fixed_abs, tag = 'smem constant byte address 0x4 - core index']
  #allocation1 [shape = 'u32[72,128]{1,0:T(1,128)}', space=vmem, size = 0x9000, scoped, tag = 'internal scratch']
  %s0 = inlined_call_operand.hbm [shape: f32[3], index: 0, kind: input, shape index: {}]
  %s1 = inlined_call_operand.hbm [shape: bf16[16,128], index: 1, kind: input, shape index: {}]
  %s2 = inlined_call_operand.hbm [shape: bf16[128,128], index: 2, kind: input, shape index: {}]
  %s3 = inlined_call_operand.vmem [shape: f32[1,128], index: 3, kind: input, shape index: {}]
  %s4 = inlined_call_operand.hbm [shape: bf16[128,128], index: 4, kind: input, shape index: {}]
  %s5 = inlined_call_operand.vmem [shape: f32[1,128], index: 5, kind: input, shape index: {}]
  %s6 = inlined_call_operand.hbm [shape: bf16[128,128], index: 6, kind: input, shape index: {}]
  %s7 = inlined_call_operand.vmem [shape: f32[1,128], index: 7, kind: input, shape index: {}]
  %s8 = inlined_call_operand.hbm [shape: f32[16,128], index: 8, kind: output, shape index: {}]
  %s9 = sld [smem:[#allocation0]]
  $region62: #{tpu_custom_call.1} parent=0
    _
  %s11 = ssub.s32 1, %s9
  %s12 = scalar_select 0, %s11, %s9
  $region1: #{tpu_custom_call.1} parent=0
    #allocation2 [shape = 'u8[512]{0}', space=smem, size = 0x200, scoped, tag = 'input window, operand 0, single buffered']
    #allocation3 [shape = 's32[1]{0}', space=sflag, size = 0x4, scoped, tag = 'scoped memory for tpu_custom_call.1']
    #allocation4 [shape = 's32[1]{0}', space=sflag, size = 0x4, scoped, tag = 'scoped memory for tpu_custom_call.1']
    #allocation5 [shape = 's32[1]{0}', space=sflag, size = 0x4, scoped, tag = 'scoped memory for tpu_custom_call.1']
    #allocation6 [shape = 'u8[4096]{0}', space=vmem, size = 0x1000, scoped, tag = 'input window, operand 1, single buffered']
    #allocation7 [shape = 'u8[32768]{0}', space=vmem, size = 0x8000, scoped, tag = 'input window, operand 2, single buffered']
    #allocation8 [shape = 's32[1]{0}', space=sflag, size = 0x4, scoped, tag = 'scoped memory for tpu_custom_call.1']
    #allocation9 [shape = 'u8[32768]{0}', space=vmem, size = 0x8000, scoped, tag = 'input window, operand 4, single buffered']
    #allocation10 [shape = 'u8[32768]{0}', space=vmem, size = 0x8000, scoped, tag = 'input window, operand 6, single buffered']
    #allocation11 [shape = 's32[1]{0}', space=sflag, size = 0x4, scoped, tag = 'scoped memory for tpu_custom_call.1']
    #allocation12 [shape = 'u8[8192]{0}', space=vmem, size = 0x2000, scoped, tag = 'output window, operand 0, single buffered']
    %13 = vsyncpa [#allocation5], 0
    %14 = vsyncpa [#allocation3], 0
    %15 = vsyncpa [#allocation8], 0
    %16 = vsyncpa [#allocation11], 0
    %17 = vsyncpa [#allocation4], 0
    // Predicated region
    $region2: #{tpu_custom_call.1} parent=1 // pred_check
      _
    $region3: #{tpu_custom_call.1} parent=1 // pred_check_branch
      %19 = sbr.rel (0) target = $region5
    $region4: #{tpu_custom_call.1} parent=1 // pred_region
      %21 = vsyncadd [#allocation5], 0
      %s23 = sshll.u32 %s0, 4
      %s24 = int_to_ptr.hbm [resolvable:$true] %s23
      %26 = dma.hbm_to_smem %s24, 16, [#allocation2], [#allocation5]
    $region5: #{tpu_custom_call.1} parent=1 // pred_fallthru
      _
    // Predicated region
    $region6: #{tpu_custom_call.1} parent=1 // pred_check
      _
    $region7: #{tpu_custom_call.1} parent=1 // pred_check_branch
      %28 = sbr.rel (0) target = $region9
    $region8: #{tpu_custom_call.1} parent=1 // pred_region
      %30 = vsyncadd [#allocation3], 0
      %s31 = sshll.u32 %s1, 4
      %s32 = int_to_ptr.hbm [resolvable:$true] %s31
      %s33 = sshll.u32 [#allocation6], 4
      %s34 = int_to_ptr.vmem [resolvable:$true] %s33
      %39 = dma.hbm_to_vmem [thread:$0]  %s32, 128, %s34, [#allocation3], 64, 64, 4
    $region9: #{tpu_custom_call.1} parent=1 // pred_fallthru
      _
    // Predicated region
    $region10: #{tpu_custom_call.1} parent=1 // pred_check
      _
    $region11: #{tpu_custom_call.1} parent=1 // pred_check_branch
      %41 = sbr.rel (0) target = $region13
    $region12: #{tpu_custom_call.1} parent=1 // pred_region
      %43 = vsyncadd [#allocation8], 0
      %s44 = sshll.u32 %s2, 4
      %s45 = int_to_ptr.hbm [resolvable:$true] %s44
      %s46 = sshll.u32 [#allocation7], 4
      %s47 = int_to_ptr.vmem [resolvable:$true] %s46
      %52 = dma.hbm_to_vmem [thread:$0]  %s45, 1024, %s47, [#allocation8], 64, 64, 4
    $region13: #{tpu_custom_call.1} parent=1 // pred_fallthru
      _
    // Predicated region
    $region14: #{tpu_custom_call.1} parent=1 // pred_check
      _
    $region15: #{tpu_custom_call.1} parent=1 // pred_check_branch
      %54 = sbr.rel (0) target = $region17
    $region16: #{tpu_custom_call.1} parent=1 // pred_region
      _
    $region17: #{tpu_custom_call.1} parent=1 // pred_fallthru
      _
    // Predicated region
    $region18: #{tpu_custom_call.1} parent=1 // pred_check
      _
    $region19: #{tpu_custom_call.1} parent=1 // pred_check_branch
      %56 = sbr.rel (0) target = $region21
    $region20: #{tpu_custom_call.1} parent=1 // pred_region
      %58 = vsyncadd [#allocation8], 0
      %s59 = sshll.u32 %s4, 4
      %s60 = int_to_ptr.hbm [resolvable:$true] %s59
      %s61 = sshll.u32 [#allocation9], 4
      %s62 = int_to_ptr.vmem [resolvable:$true] %s61
      %67 = dma.hbm_to_vmem [thread:$0]  %s60, 1024, %s62, [#allocation8], 64, 64, 4
    $region21: #{tpu_custom_call.1} parent=1 // pred_fallthru
      _
    // Predicated region
    $region22: #{tpu_custom_call.1} parent=1 // pred_check
      _
    $region23: #{tpu_custom_call.1} parent=1 // pred_check_branch
      %69 = sbr.rel (0) target = $region25
    $region24: #{tpu_custom_call.1} parent=1 // pred_region
      _
    $region25: #{tpu_custom_call.1} parent=1 // pred_fallthru
      _
    // Predicated region
    $region26: #{tpu_custom_call.1} parent=1 // pred_check
      _
    $region27: #{tpu_custom_call.1} parent=1 // pred_check_branch
      %71 = sbr.rel (0) target = $region29
    $region28: #{tpu_custom_call.1} parent=1 // pred_region
      %73 = vsyncadd [#allocation11], 0
      %s74 = sshll.u32 %s6, 4
      %s75 = int_to_ptr.hbm [resolvable:$true] %s74
      %s76 = sshll.u32 [#allocation10], 4
      %s77 = int_to_ptr.vmem [resolvable:$true] %s76
      %82 = dma.hbm_to_vmem [thread:$0]  %s75, 1024, %s77, [#allocation11], 64, 64, 4
    $region29: #{tpu_custom_call.1} parent=1 // pred_fallthru
      _
    // Predicated region
    $region30: #{tpu_custom_call.1} parent=1 // pred_check
      _
    $region31: #{tpu_custom_call.1} parent=1 // pred_check_branch
      %84 = sbr.rel (0) target = $region33
    $region32: #{tpu_custom_call.1} parent=1 // pred_region
      _
    $region33: #{tpu_custom_call.1} parent=1 // pred_fallthru
      _
    // Predicated region
    $region34: #{tpu_custom_call.1} parent=1 // pred_check
      _
    $region35: #{tpu_custom_call.1} parent=1 // pred_check_branch
      %86 = sbr.rel (0) target = $region37
    $region36: #{tpu_custom_call.1} parent=1 // pred_region
      %88 = dma.done [#allocation5], 16
    $region37: #{tpu_custom_call.1} parent=1 // pred_fallthru
      _
    // Predicated region
    $region38: #{tpu_custom_call.1} parent=1 // pred_check
      _
    $region39: #{tpu_custom_call.1} parent=1 // pred_check_branch
      %90 = sbr.rel (0) target = $region41
    $region40: #{tpu_custom_call.1} parent=1 // pred_region
      %92 = dma.done [#allocation3], 128
    $region41: #{tpu_custom_call.1} parent=1 // pred_fallthru
      _
    // Predicated region
    $region42: #{tpu_custom_call.1} parent=1 // pred_check
      _
    $region43: #{tpu_custom_call.1} parent=1 // pred_check_branch
      %94 = sbr.rel (0) target = $region45
    $region44: #{tpu_custom_call.1} parent=1 // pred_region
      %96 = dma.done [#allocation8], 1024
    $region45: #{tpu_custom_call.1} parent=1 // pred_fallthru
      _
    // Predicated region
    $region46: #{tpu_custom_call.1} parent=1 // pred_check
      _
    $region47: #{tpu_custom_call.1} parent=1 // pred_check_branch
      %98 = sbr.rel (0) target = $region49
    $region48: #{tpu_custom_call.1} parent=1 // pred_region
      %100 = dma.done [#allocation8], 1024
    $region49: #{tpu_custom_call.1} parent=1 // pred_fallthru
      _
    // Predicated region
    $region50: #{tpu_custom_call.1} parent=1 // pred_check
      _
    $region51: #{tpu_custom_call.1} parent=1 // pred_check_branch
      %102 = sbr.rel (0) target = $region53
    $region52: #{tpu_custom_call.1} parent=1 // pred_region
      %104 = dma.done [#allocation11], 1024
    $region53: #{tpu_custom_call.1} parent=1 // pred_fallthru
      _
    %105 = sfence
    %v106 = vld [vmem:[#allocation6] sm:$0xf]
    %v107 = vld [vmem:[#allocation6 + $0x4] sm:$0xf]
    %v108 = vld [vmem:[#allocation7] sm:$0xf]
    %v109 = vld [vmem:[#allocation7 + $0x4] sm:$0xf]
    %v110 = vld [vmem:[#allocation7 + $0x8] sm:$0xf]
    %v111 = vld [vmem:[#allocation7 + $0xc] sm:$0xf]
    %v112 = vld [vmem:[#allocation7 + $0x10] sm:$0xf]
    %v113 = vld [vmem:[#allocation7 + $0x14] sm:$0xf]
    %v114 = vld [vmem:[#allocation7 + $0x18] sm:$0xf]
    %v115 = vld [vmem:[#allocation7 + $0x1c] sm:$0xf]
    %v116 = vld [vmem:[#allocation7 + $0x20] sm:$0xf]
    %v117 = vld [vmem:[#allocation7 + $0x24] sm:$0xf]
    %v118 = vld [vmem:[#allocation7 + $0x28] sm:$0xf]
    %v119 = vld [vmem:[#allocation7 + $0x2c] sm:$0xf]
    %v120 = vld [vmem:[#allocation7 + $0x30] sm:$0xf]
    %v121 = vld [vmem:[#allocation7 + $0x34] sm:$0xf]
    %v122 = vld [vmem:[#allocation7 + $0x38] sm:$0xf]
    %v123 = vld [vmem:[#allocation7 + $0x3c] sm:$0xf]
    %v124 = vld [vmem:[%s3] sm:$0x1]
    %v126 = vperm.slane %v124, 0
    %v130 = vunpack.c.l.b16 %v106
    %v131 = vunpack.c.l.b16 %v107
    %v132 = vpack.c.b16 %v131, %v130
    %v150 = vunpack.c.l.b16 %v108
    %v151 = vunpack.c.l.b16 %v109
    %v152 = vunpack.c.l.b16 %v110
    %v153 = vunpack.c.l.b16 %v111
    %v154 = vunpack.c.l.b16 %v112
    %v155 = vunpack.c.l.b16 %v113
    %v156 = vunpack.c.l.b16 %v114
    %v157 = vunpack.c.l.b16 %v115
    %v158 = vunpack.c.l.b16 %v116
    %v159 = vunpack.c.l.b16 %v117
    %v160 = vunpack.c.l.b16 %v118
    %v161 = vunpack.c.l.b16 %v119
    %v162 = vunpack.c.l.b16 %v120
    %v163 = vunpack.c.l.b16 %v121
    %v164 = vunpack.c.l.b16 %v122
    %v165 = vunpack.c.l.b16 %v123
    %v166 = vpack.c.b16 %v151, %v150
    %v167 = vpack.c.b16 %v153, %v152
    %v168 = vpack.c.b16 %v155, %v154
    %v169 = vpack.c.b16 %v157, %v156
    %v170 = vpack.c.b16 %v159, %v158
    %v171 = vpack.c.b16 %v161, %v160
    %v172 = vpack.c.b16 %v163, %v162
    %v173 = vpack.c.b16 %v165, %v164
    %182 = vmatpush.bf16.msra.mxu0 %v173
    %183 = vmatpush.bf16.msra.mxu0 %v172
    %184 = vmatpush.bf16.msra.mxu0 %v171
    %185 = vmatpush.bf16.msra.mxu0 %v170
    %186 = vmatpush.bf16.msra.mxu0 %v169
    %187 = vmatpush.bf16.msra.mxu0 %v168
    %188 = vmatpush.bf16.msra.mxu0 %v167
    %189 = vmatpush.bf16.msra.mxu0 %v166
    %190 = vmatmul.bf16.gmra.mxu0 %v132
    %v191 = vpop.f32.mrf.mxu0
    %v192 = vadd.f32 %v126, %v191
    %v193 = vpop.f32.mrf.mxu0
    %v194 = vadd.f32 %v126, %v193
    %195 = vdwg.mxu0
    %s196 = sld [smem:[#allocation2]]
    %vm197 = vcmp.gt.f32.partialorder %v192, 0.0
    %vm198 = vcmp.gt.f32.partialorder %v194, 0.0
    %v199 = vstv %s196
    %v200 = vmul.f32 %v199, %v192
    %v201 = vmul.f32 %v199, %v194
    %v202 = vsel %vm197, %v192, %v200
    %v203 = vsel %vm198, %v194, %v201
    %v204 = vpack.c.bf16 %v203, %v202
    %v205 = vld [vmem:[#allocation9] sm:$0xf]
    %v206 = vld [vmem:[#allocation9 + $0x4] sm:$0xf]
    %v207 = vld [vmem:[#allocation9 + $0x8] sm:$0xf]
    %v208 = vld [vmem:[#allocation9 + $0xc] sm:$0xf]
    %v209 = vld [vmem:[#allocation9 + $0x10] sm:$0xf]
    %v210 = vld [vmem:[#allocation9 + $0x14] sm:$0xf]
    %v211 = vld [vmem:[#allocation9 + $0x18] sm:$0xf]
    %v212 = vld [vmem:[#allocation9 + $0x1c] sm:$0xf]
    %v213 = vld [vmem:[#allocation9 + $0x20] sm:$0xf]
    %v214 = vld [vmem:[#allocation9 + $0x24] sm:$0xf]
    %v215 = vld [vmem:[#allocation9 + $0x28] sm:$0xf]
    %v216 = vld [vmem:[#allocation9 + $0x2c] sm:$0xf]
    %v217 = vld [vmem:[#allocation9 + $0x30] sm:$0xf]
    %v218 = vld [vmem:[#allocation9 + $0x34] sm:$0xf]
    %v219 = vld [vmem:[#allocation9 + $0x38] sm:$0xf]
    %v220 = vld [vmem:[#allocation9 + $0x3c] sm:$0xf]
    %v221 = vld [vmem:[%s5] sm:$0x1]
    %v223 = vperm.slane %v221, 0
    %v241 = vunpack.c.l.b16 %v205
    %v242 = vunpack.c.l.b16 %v206
    %v243 = vunpack.c.l.b16 %v207
    %v244 = vunpack.c.l.b16 %v208
    %v245 = vunpack.c.l.b16 %v209
    %v246 = vunpack.c.l.b16 %v210
    %v247 = vunpack.c.l.b16 %v211
    %v248 = vunpack.c.l.b16 %v212
    %v249 = vunpack.c.l.b16 %v213
    %v250 = vunpack.c.l.b16 %v214
    %v251 = vunpack.c.l.b16 %v215
    %v252 = vunpack.c.l.b16 %v216
    %v253 = vunpack.c.l.b16 %v217
    %v254 = vunpack.c.l.b16 %v218
    %v255 = vunpack.c.l.b16 %v219
    %v256 = vunpack.c.l.b16 %v220
    %v257 = vpack.c.b16 %v242, %v241
    %v258 = vpack.c.b16 %v244, %v243
    %v259 = vpack.c.b16 %v246, %v245
    %v260 = vpack.c.b16 %v248, %v247
    %v261 = vpack.c.b16 %v250, %v249
    %v262 = vpack.c.b16 %v252, %v251
    %v263 = vpack.c.b16 %v254, %v253
    %v264 = vpack.c.b16 %v256, %v255
    %273 = vmatpush.bf16.msra.mxu0 %v264
    %274 = vmatpush.bf16.msra.mxu0 %v263
    %275 = vmatpush.bf16.msra.mxu0 %v262
    %276 = vmatpush.bf16.msra.mxu0 %v261
    %277 = vmatpush.bf16.msra.mxu0 %v260
    %278 = vmatpush.bf16.msra.mxu0 %v259
    %279 = vmatpush.bf16.msra.mxu0 %v258
    %280 = vmatpush.bf16.msra.mxu0 %v257
    %281 = vmatmul.bf16.gmra.mxu0 %v204
    %v282 = vpop.f32.mrf.mxu0
    %v283 = vadd.f32 %v223, %v282
    %v284 = vpop.f32.mrf.mxu0
    %v285 = vadd.f32 %v223, %v284
    %286 = vdwg.mxu0
    %s287 = sld [smem:[#allocation2 + $0x1]]
    %vm288 = vcmp.gt.f32.partialorder %v283, 0.0
    %vm289 = vcmp.gt.f32.partialorder %v285, 0.0
    %v290 = vstv %s287
    %v291 = vmul.f32 %v290, %v283
    %v292 = vmul.f32 %v290, %v285
    %v293 = vsel %vm288, %v283, %v291
    %v294 = vsel %vm289, %v285, %v292
    %v295 = vpack.c.bf16 %v294, %v293
    %v296 = vld [vmem:[#allocation10] sm:$0xf]
    %v297 = vld [vmem:[#allocation10 + $0x4] sm:$0xf]
    %v298 = vld [vmem:[#allocation10 + $0x8] sm:$0xf]
    %v299 = vld [vmem:[#allocation10 + $0xc] sm:$0xf]
    %v300 = vld [vmem:[#allocation10 + $0x10] sm:$0xf]
    %v301 = vld [vmem:[#allocation10 + $0x14] sm:$0xf]
    %v302 = vld [vmem:[#allocation10 + $0x18] sm:$0xf]
    %v303 = vld [vmem:[#allocation10 + $0x1c] sm:$0xf]
    %v304 = vld [vmem:[#allocation10 + $0x20] sm:$0xf]
    %v305 = vld [vmem:[#allocation10 + $0x24] sm:$0xf]
    %v306 = vld [vmem:[#allocation10 + $0x28] sm:$0xf]
    %v307 = vld [vmem:[#allocation10 + $0x2c] sm:$0xf]
    %v308 = vld [vmem:[#allocation10 + $0x30] sm:$0xf]
    %v309 = vld [vmem:[#allocation10 + $0x34] sm:$0xf]
    %v310 = vld [vmem:[#allocation10 + $0x38] sm:$0xf]
    %v311 = vld [vmem:[#allocation10 + $0x3c] sm:$0xf]
    %v312 = vld [vmem:[%s7] sm:$0x1]
    %v314 = vperm.slane %v312, 0
    %v332 = vunpack.c.l.b16 %v296
    %v333 = vunpack.c.l.b16 %v297
    %v334 = vunpack.c.l.b16 %v298
    %v335 = vunpack.c.l.b16 %v299
    %v336 = vunpack.c.l.b16 %v300
    %v337 = vunpack.c.l.b16 %v301
    %v338 = vunpack.c.l.b16 %v302
    %v339 = vunpack.c.l.b16 %v303
    %v340 = vunpack.c.l.b16 %v304
    %v341 = vunpack.c.l.b16 %v305
    %v342 = vunpack.c.l.b16 %v306
    %v343 = vunpack.c.l.b16 %v307
    %v344 = vunpack.c.l.b16 %v308
    %v345 = vunpack.c.l.b16 %v309
    %v346 = vunpack.c.l.b16 %v310
    %v347 = vunpack.c.l.b16 %v311
    %v348 = vpack.c.b16 %v333, %v332
    %v349 = vpack.c.b16 %v335, %v334
    %v350 = vpack.c.b16 %v337, %v336
    %v351 = vpack.c.b16 %v339, %v338
    %v352 = vpack.c.b16 %v341, %v340
    %v353 = vpack.c.b16 %v343, %v342
    %v354 = vpack.c.b16 %v345, %v344
    %v355 = vpack.c.b16 %v347, %v346
    %364 = vmatpush.bf16.msra.mxu0 %v355
    %365 = vmatpush.bf16.msra.mxu0 %v354
    %366 = vmatpush.bf16.msra.mxu0 %v353
    %367 = vmatpush.bf16.msra.mxu0 %v352
    %368 = vmatpush.bf16.msra.mxu0 %v351
    %369 = vmatpush.bf16.msra.mxu0 %v350
    %370 = vmatpush.bf16.msra.mxu0 %v349
    %371 = vmatpush.bf16.msra.mxu0 %v348
    %372 = vmatmul.bf16.gmra.mxu0 %v295
    %v373 = vpop.f32.mrf.mxu0
    %v374 = vadd.f32 %v314, %v373
    %v375 = vpop.f32.mrf.mxu0
    %v376 = vadd.f32 %v314, %v375
    %377 = vdwg.mxu0
    %v378 = vmul.f32 %v374, 0.5
    %v379 = vmul.f32 %v376, 0.5
    %v380 = vtanh.pop %v378
    %v381 = vtanh.pop %v379
    %v382 = vmul.f32 %v380, 0.5
    %v383 = vmul.f32 %v381, 0.5
    %v384 = vadd.f32 %v382, 0.5
    %v385 = vadd.f32 %v383, 0.5
    %386 = vst [vmem:[#allocation12] sm:$0xff] %v384
    %387 = vst [vmem:[#allocation12 + $0x8] sm:$0xff] %v385
    // Predicated region
    $region54: #{tpu_custom_call.1} parent=1 // pred_check
      _
    $region55: #{tpu_custom_call.1} parent=1 // pred_check_branch
      %389 = sbr.rel (0) target = $region57
    $region56: #{tpu_custom_call.1} parent=1 // pred_region
      %391 = vsyncadd [#allocation4], 0
      %s392 = sshll.u32 [#allocation12], 4
      %s393 = int_to_ptr.vmem [resolvable:$true] %s392
      %s394 = sshll.u32 %s8, 4
      %s395 = int_to_ptr.hbm [resolvable:$true] %s394
      %400 = dma.vmem_to_hbm [thread:$0]  %s393, 256, %s395, [#allocation4], 128, 128, 8
    $region57: #{tpu_custom_call.1} parent=1 // pred_fallthru
      _
    // Predicated region
    $region58: #{tpu_custom_call.1} parent=1 // pred_check
      _
    $region59: #{tpu_custom_call.1} parent=1 // pred_check_branch
      %402 = sbr.rel (0) target = $region61
    $region60: #{tpu_custom_call.1} parent=1 // pred_region
      %404 = dma.done [#allocation4], 256
    $region61: #{tpu_custom_call.1} parent=1 // pred_fallthru
      _
    %405 = vsyncpa [#allocation3], 1
    %406 = vsyncpa [#allocation8], 1
    %407 = vsyncpa [#allocation11], 1
    %408 = vsyncpa [#allocation4], 1
    %409 = vsyncpa [#allocation5], 1

</llo_original>
